<compile_context>
chip_gen: v7x
topology: tpu7x:2x2x1
jax: 0.10.0
libtpu: 0.0.40
codegen_flags: <defaults>
</compile_context>

<pallas_src>
import jax
import jax.numpy as jnp
from jax.experimental import pallas as pl
from jax.experimental.pallas import tpu as pltpu


def _round_up(x, m):
    return (x + m - 1) // m * m


def _convt_bn_silu_kernel(x_ref, w_ref, b_ref, o_ref):
    # MXU: (rows, pack*C1) @ (pack*C1, pack*Ko), f32 accumulate.
    y = jnp.dot(x_ref[...], w_ref[...], preferred_element_type=jnp.float32)
    y = y + b_ref[...]                                   # folded-BN bias (f32)
    o_ref[...] = (y * jax.nn.sigmoid(y)).astype(o_ref.dtype)   # SiLU, cast on store


def conv_transpose_bn_silu(x_nchw, weight, gamma, beta, running_mean,
                           running_var, *, eps=1e-5, k=2, s=2,
                           tile_pixels=1024,
                           compute_dtype=jnp.bfloat16,
                           out_dtype=jnp.bfloat16):
    """ConvTranspose2d(k=2, s=2, p=0, bias=False) + BatchNorm2d(eval) + SiLU."""
    N, C1, H, W = x_nchw.shape
    C1w, C2, kh, kw = weight.shape
    assert C1w == C1 and kh == k and kw == k and s == k, \
        "non-overlapping case (k == s, p == 0) only"
    # TODO(synk): general k != s / p > 0 (overlapping taps) and training-mode
    # BatchNorm batch statistics are not implemented (inference forward only).

    ko = kh * kw * C2

    # ---- fold BN (eval) into per-column weight scale + bias ------------------
    inv_std = 1.0 / jnp.sqrt(running_var.astype(jnp.float32) + eps)
    scale_c = gamma.astype(jnp.float32) * inv_std                     # (C2,)
    bias_c = beta.astype(jnp.float32) - running_mean.astype(jnp.float32) * scale_c

    # weight (C1, C2, kh, kw) -> (C1, kh*kw*C2); columns ordered (kh, kw, C2).
    w2 = jnp.transpose(weight.astype(jnp.float32), (0, 2, 3, 1)).reshape(C1, ko)
    w2 = w2 * jnp.tile(scale_c, kh * kw)[None, :]                     # fold BN scale

    # ---- pack pixels so the stored lane width is >= 128 ----------------------
    pack = max(1, -(-128 // ko))
    wp = jnp.kron(jnp.eye(pack, dtype=jnp.float32), w2).astype(compute_dtype)
    bp = jnp.tile(bias_c, pack * kh * kw).reshape(1, pack * ko)       # f32 bias

    # ---- flatten input (one row per pixel), choose block size, pad -----------
    M = N * H * W
    xm = jnp.transpose(x_nchw, (0, 2, 3, 1)).reshape(M, C1)

    m_align = pack * 8                                   # packed sublane alignment
    in_b = jnp.dtype(compute_dtype).itemsize
    out_b = jnp.dtype(out_dtype).itemsize
    # Cap block so double-buffered in+out blocks fit comfortably in scoped VMEM
    # on every TPU generation (v5e 16 MiB default, v7x 32 MiB / 64 MiB phys).
    vmem_budget = 8 * 1024 * 1024
    bm_cap = max(m_align, vmem_budget // (2 * (C1 * in_b + ko * out_b)))
    bm = min(tile_pixels, bm_cap)
    # keep >= 2 grid steps when M allows so v7x megacore can split the grid
    bm = min(bm, _round_up(max(-(-M // 2), m_align), m_align))
    bm = _round_up(bm, m_align)
    m_pad = _round_up(M, bm)

    if m_pad != M:
        xm = jnp.pad(xm, ((0, m_pad - M), (0, 0)))
    xp = xm.astype(compute_dtype).reshape(m_pad // pack, pack * C1)

    rows = bm // pack                                    # packed rows per step
    grid = (m_pad // bm,)

    cost = pl.CostEstimate(
        flops=2 * (m_pad // pack) * (pack * C1) * (pack * ko),
        transcendentals=m_pad * ko,
        bytes_accessed=(xp.size * in_b + wp.size * in_b + bp.size * 4
                        + (m_pad // pack) * (pack * ko) * out_b),
    )

    out_packed = pl.pallas_call(
        _convt_bn_silu_kernel,
        out_shape=jax.ShapeDtypeStruct((m_pad // pack, pack * ko), out_dtype),
        grid_spec=pltpu.PrefetchScalarGridSpec(
            num_scalar_prefetch=0,
            grid=grid,
            in_specs=[
                pl.BlockSpec((rows, pack * C1), lambda i: (i, 0)),
                pl.BlockSpec((pack * C1, pack * ko), lambda i: (0, 0)),
                pl.BlockSpec((1, pack * ko), lambda i: (0, 0)),
            ],
            out_specs=pl.BlockSpec((rows, pack * ko), lambda i: (i, 0)),
        ),
        compiler_params=pltpu.CompilerParams(
            dimension_semantics=("parallel",)),
        cost_estimate=cost,
    )(xp, wp, bp)

    # Scatter the per-pixel 2x2 blocks and go back to NCHW.  These reshapes /
    # transposes are fused by XLA into the single NHWC->NCHW copy that the
    # NCHW public interface requires anyway.
    out = out_packed.reshape(m_pad, ko)[:M]
    out = out.reshape(N, H, W, kh, kw, C2)
    out = jnp.transpose(out, (0, 1, 3, 2, 4, 5)).reshape(N, H * kh, W * kw, C2)
    return jnp.transpose(out, (0, 3, 1, 2))


if __name__ == "__main__":
    # Module hyperparameters (matches ConvTranspose(c1, c2) defaults).
    c1, c2, k, s = 4, 8, 2, 2
    N, H, W = 2, 16, 16
    eps = 1e-5

    key = jax.random.PRNGKey(0)
    kx, kw_, kg, kb, km, kv = jax.random.split(key, 6)

    x = jax.random.normal(kx, (N, c1, H, W), dtype=jnp.float32)
    # nn.ConvTranspose2d weight shape: (in_channels, out_channels, kh, kw)
    weight = jax.random.normal(kw_, (c1, c2, k, k), dtype=jnp.float32) * 0.1
    gamma = 1.0 + 0.1 * jax.random.normal(kg, (c2,), dtype=jnp.float32)
    beta = 0.1 * jax.random.normal(kb, (c2,), dtype=jnp.float32)
    running_mean = 0.1 * jax.random.normal(km, (c2,), dtype=jnp.float32)
    running_var = jax.random.uniform(kv, (c2,), dtype=jnp.float32,
                                     minval=0.5, maxval=1.5)
    # TODO(synk): BN uses inference (running-stat) semantics; PyTorch
    # training-mode batch statistics are not reproduced.

    out = conv_transpose_bn_silu(x, weight, gamma, beta, running_mean,
                                 running_var, eps=eps, k=k, s=s)
    out = jax.block_until_ready(out)
    assert out.shape == (N, c2, 2 * H, 2 * W)

    # Pure-JAX f32 reference (same math through XLA) for a sanity check.
    y = jnp.einsum("nihw,iouv->nohwuv", x, weight)          # (N,C2,H,W,kh,kw)
    y = jnp.transpose(y, (0, 1, 2, 4, 3, 5)).reshape(N, c2, 2 * H, 2 * W)
    sc = (gamma / jnp.sqrt(running_var + eps))[None, :, None, None]
    bi = (beta - running_mean * gamma / jnp.sqrt(running_var + eps))[None, :, None, None]
    y = y * sc + bi
    ref = y * jax.nn.sigmoid(y)

    # bf16 inputs/outputs -> looser tolerance than a pure-f32 path.
    assert jnp.allclose(out.astype(jnp.float32), ref, atol=3e-2, rtol=3e-2), \
        "mismatch vs reference"
    print("KERNEL_OK")
</pallas_src>

<mosaic_0001>
module attributes {stable_mosaic.version = 11 : i64} {
  func.func @_convt_bn_silu_kernel(%arg0: i32, %arg1: memref<64x16xbf16, #tpu.memory_space<vmem>>, %arg2: memref<16x128xbf16, #tpu.memory_space<vmem>>, %arg3: memref<1x128xf32, #tpu.memory_space<vmem>>, %arg4: memref<64x128xbf16, #tpu.memory_space<vmem>>) attributes {dimension_semantics = [#tpu.dimension_semantics<parallel>], iteration_bounds = array<i64: 2>, scalar_prefetch = 0 : i64, scratch_operands = 0 : i64, tpu.core_type = #tpu.core_type<tc>, window_params = [{transform_indices = @transform_0, window_bounds = array<i64: 64, 16>}, {pipeline_mode = #tpu.pipeline_mode<synchronous>, transform_indices = @transform_1, window_bounds = array<i64: 16, 128>}, {pipeline_mode = #tpu.pipeline_mode<synchronous>, transform_indices = @transform_2, window_bounds = array<i64: 1, 128>}, {transform_indices = @transform_3, window_bounds = array<i64: 64, 128>}]} {
    %c0 = arith.constant 0 : index
    %c0_0 = arith.constant 0 : index
    %0 = vector.load %arg1[%c0, %c0_0] : memref<64x16xbf16, #tpu.memory_space<vmem>>, vector<64x16xbf16>
    %c0_1 = arith.constant 0 : index
    %c0_2 = arith.constant 0 : index
    %1 = vector.load %arg2[%c0_1, %c0_2] : memref<16x128xbf16, #tpu.memory_space<vmem>>, vector<16x128xbf16>
    %cst = arith.constant dense<0.000000e+00> : vector<64x128xf32>
    %2 = tpu.matmul %0, %1, %cst {dimension_numbers = #tpu.dot_dimension_numbers<[1], [0], [0], [1], [0, 0, 1, 1], [], []>} : vector<64x16xbf16>, vector<16x128xbf16>, vector<64x128xf32> -> vector<64x128xf32>
    %c0_3 = arith.constant 0 : index
    %c0_4 = arith.constant 0 : index
    %3 = vector.load %arg3[%c0_3, %c0_4] : memref<1x128xf32, #tpu.memory_space<vmem>>, vector<1x128xf32>
    %4 = vector.broadcast %3 : vector<1x128xf32> to vector<64x128xf32>
    %5 = arith.addf %2, %4 : vector<64x128xf32>
    %6 = arith.negf %5 : vector<64x128xf32>
    %7 = math.exp %6 : vector<64x128xf32>
    %cst_5 = arith.constant 1.000000e+00 : f32
    %8 = vector.broadcast %cst_5 : f32 to vector<64x128xf32>
    %9 = arith.addf %8, %7 : vector<64x128xf32>
    %10 = arith.divf %8, %9 : vector<64x128xf32>
    %11 = arith.mulf %5, %10 : vector<64x128xf32>
    %12 = arith.truncf %11 : vector<64x128xf32> to vector<64x128xbf16>
    %c0_6 = arith.constant 0 : index
    %c0_7 = arith.constant 0 : index
    %13 = vector.load %arg4[%c0_6, %c0_7] : memref<64x128xbf16, #tpu.memory_space<vmem>>, vector<64x128xbf16>
    tpu.vector_store %arg4[%c0_6, %c0_7], %12 {strides = array<i32>} : memref<64x128xbf16, #tpu.memory_space<vmem>>, vector<64x128xbf16>,
    return
  }
  func.func @transform_0(%arg0: i32) -> (i32, i32) {
    %c0_i32 = arith.constant 0 : i32
    %c0_i32_0 = arith.constant 0 : i32
    return %arg0, %c0_i32 : i32, i32
  }
  func.func @transform_1(%arg0: i32) -> (i32, i32) {
    %c0_i32 = arith.constant 0 : i32
    %c0_i32_0 = arith.constant 0 : i32
    %c0_i32_1 = arith.constant 0 : i32
    return %c0_i32, %c0_i32_0 : i32, i32
  }
  func.func @transform_2(%arg0: i32) -> (i32, i32) {
    %c0_i32 = arith.constant 0 : i32
    %c0_i32_0 = arith.constant 0 : i32
    %c0_i32_1 = arith.constant 0 : i32
    return %c0_i32, %c0_i32_0 : i32, i32
  }
  func.func @transform_3(%arg0: i32) -> (i32, i32) {
    %c0_i32 = arith.constant 0 : i32
    %c0_i32_0 = arith.constant 0 : i32
    return %arg0, %c0_i32 : i32, i32
  }
}

</mosaic_0001>

<llo_original>
// kernel: tpu_custom_call.1
$region0: #{tpu_custom_call.1}
  #allocation0 [shape = 'u32[]', space=smem, size = 0x4, offset = 0x4, fixed_abs, tag = 'smem constant byte address 0x4 - core index']
  #allocation1 [shape = 'u32[144,128]{1,0:T(1,128)}', space=vmem, size = 0x12000, scoped, tag = 'internal scratch']
  %s0 = inlined_call_operand.vmem [shape: bf16[128,16], index: 0, kind: input, shape index: {}]
  %s1 = inlined_call_operand.vmem [shape: bf16[16,128], index: 1, kind: input, shape index: {}]
  %s2 = inlined_call_operand.vmem [shape: f32[1,128], index: 2, kind: input, shape index: {}]
  %s3 = inlined_call_operand.hbm [shape: bf16[128,128], index: 3, kind: output, shape index: {}]
  %s4 = sld [smem:[#allocation0]]
  $region45: #{tpu_custom_call.1} parent=0
    _
  %s6 = ssub.s32 1, %s4
  %s7 = scalar_select 0, %s6, %s4
  $region1: #{tpu_custom_call.1} parent=0
    #allocation2 [shape = 'u8[32768]{0}', space=vmem, size = 0x8000, scoped, tag = 'output window, operand 0']
    #allocation3 [shape = 's32[2]{0}', space=sflag, size = 0x8, scoped, tag = 'scoped memory for tpu_custom_call.1']
    %8 = vsyncpa [#allocation3], 0
    %s9 = scalar_lea.sflag [#allocation3], 1
    %10 = vsyncpa %s9, 0
    loop: start=0, step=1, limit=4
    $region2: #{tpu_custom_call.1} parent=1 // loop_pre_header
      _
    $region3: #{tpu_custom_call.1} parent=1 // loop_header
      %s12 = sphi 0, %s16
      %p13 = scmp.ge.s32.totalorder %s12, 4
      %s22 = sphi 0, %s24
      %s25 = sphi 0, %s22
      %s26 = sphi 0, %s25
      %s42 = sphi 0, %s26
      %s46 = sphi 0, %s46
      %s48 = sphi 0, %s46
      %s49 = sphi 0, %s48
      %s63 = sphi 0, %s49
      %s67 = sphi 0, %s67
      %s69 = sphi 0, %s67
      %s70 = sphi 0, %s69
      %s84 = sphi 0, %s70
      %s90 = sphi 0, %s92
      %s93 = sphi 0, %s90
      %s94 = sphi 0, %s93
      %s110 = sphi 0, %s94
    $region4: #{tpu_custom_call.1} parent=1 // loop_header_branch
      %15 = sbr.rel (%p13) target = $region8
    $region5: #{tpu_custom_call.1} parent=1 // loop_body
      %s17 = ssub.s32 %s12, 1
      %s18 = ssub.s32 %s12, 2
      %s19 = sadd.s32 %s12, 1
      %s20 = ssub.s32 %s12, %s19
      %p21 = scmp.eq.s32.totalorder %s20, 0
      %s23 = sadd.s32 %s22, 1
      %s24 = scalar_select %p21, %s22, %s23
      %p27 = pneg %p21
      %p28 = scmp.eq.s32.totalorder %s12, 1
      %p29 = por %p27, %p28
      %p30 = scmp.ne.s32.totalorder %s22, %s25
      %p31 = scmp.eq.s32.totalorder %s12, 0
      %p32 = por %p30, %p31
      %p33 = scmp.ne.s32.totalorder %s22, %s25
      %p34 = scmp.eq.s32.totalorder %s17, 1
      %p35 = por %p33, %p34
      %p36 = scmp.ne.s32.totalorder %s25, %s26
      %p37 = scmp.eq.s32.totalorder %s17, 0
      %p38 = por %p36, %p37
      %p39 = scmp.ne.s32.totalorder %s25, %s26
      %p40 = scmp.eq.s32.totalorder %s18, 1
      %p41 = por %p39, %p40
      %p43 = scmp.ne.s32.totalorder %s26, %s42
      %p44 = scmp.eq.s32.totalorder %s18, 0
      %p45 = por %p43, %p44
      %s47 = sadd.s32 %s46, 1
      %p50 = scmp.eq.s32.totalorder %s12, 1
      %p51 = scmp.ne.s32.totalorder %s46, %s48
      %p52 = scmp.eq.s32.totalorder %s12, 0
      %p53 = por %p51, %p52
      %p54 = scmp.ne.s32.totalorder %s46, %s48
      %p55 = scmp.eq.s32.totalorder %s17, 1
      %p56 = por %p54, %p55
      %p57 = scmp.ne.s32.totalorder %s48, %s49
      %p58 = scmp.eq.s32.totalorder %s17, 0
      %p59 = por %p57, %p58
      %p60 = scmp.ne.s32.totalorder %s48, %s49
      %p61 = scmp.eq.s32.totalorder %s18, 1
      %p62 = por %p60, %p61
      %p64 = scmp.ne.s32.totalorder %s49, %s63
      %p65 = scmp.eq.s32.totalorder %s18, 0
      %p66 = por %p64, %p65
      %s68 = sadd.s32 %s67, 1
      %p71 = scmp.eq.s32.totalorder %s12, 1
      %p72 = scmp.ne.s32.totalorder %s67, %s69
      %p73 = scmp.eq.s32.totalorder %s12, 0
      %p74 = por %p72, %p73
      %p75 = scmp.ne.s32.totalorder %s67, %s69
      %p76 = scmp.eq.s32.totalorder %s17, 1
      %p77 = por %p75, %p76
      %p78 = scmp.ne.s32.totalorder %s69, %s70
      %p79 = scmp.eq.s32.totalorder %s17, 0
      %p80 = por %p78, %p79
      %p81 = scmp.ne.s32.totalorder %s69, %s70
      %p82 = scmp.eq.s32.totalorder %s18, 1
      %p83 = por %p81, %p82
      %p85 = scmp.ne.s32.totalorder %s70, %s84
      %p86 = scmp.eq.s32.totalorder %s18, 0
      %p87 = por %p85, %p86
      %s88 = ssub.s32 %s12, %s19
      %p89 = scmp.eq.s32.totalorder %s88, 0
      %s91 = sadd.s32 %s90, 1
      %s92 = scalar_select %p89, %s90, %s91
      %p95 = pneg %p89
      %p96 = scmp.eq.s32.totalorder %s12, 1
      %p97 = por %p95, %p96
      %p98 = scmp.ne.s32.totalorder %s90, %s93
      %p99 = scmp.eq.s32.totalorder %s12, 0
      %p100 = por %p98, %p99
      %p101 = scmp.ne.s32.totalorder %s90, %s93
      %p102 = scmp.eq.s32.totalorder %s17, 1
      %p103 = por %p101, %p102
      %p104 = scmp.ne.s32.totalorder %s93, %s94
      %p105 = scmp.eq.s32.totalorder %s17, 0
      %p106 = por %p104, %p105
      %p107 = scmp.ne.s32.totalorder %s93, %s94
      %p108 = scmp.eq.s32.totalorder %s18, 1
      %p109 = por %p107, %p108
      %p111 = scmp.ne.s32.totalorder %s94, %s110
      %p112 = scmp.eq.s32.totalorder %s18, 0
      %p113 = por %p111, %p112
      %p114 = scmp.le.s32.totalorder 1, %s12
      %p115 = scmp.lt.s32.totalorder %s12, 3
      %p116 = pnand %p114, %p115
      %p117 = pneg %p116
      // Predicated region
      $region9: #{tpu_custom_call.1} parent=5 // pred_check
        _
      $region10: #{tpu_custom_call.1} parent=5 // pred_check_branch
        %119 = sbr.rel (%p116) target = $region12
      $region11: #{tpu_custom_call.1} parent=5 // pred_region
        %s120 = ssub.s32 %s12, 1
        // Predicated region
        $region13: #{tpu_custom_call.1} parent=11 // pred_check
          %p121 = pneg %p59
        $region14: #{tpu_custom_call.1} parent=11 // pred_check_branch
          %123 = sbr.rel (%p121) target = $region16
        $region15: #{tpu_custom_call.1} parent=11 // pred_region
          _
        $region16: #{tpu_custom_call.1} parent=11 // pred_fallthru
          _
        // Predicated region
        $region17: #{tpu_custom_call.1} parent=11 // pred_check
          %p124 = pneg %p80
        $region18: #{tpu_custom_call.1} parent=11 // pred_check_branch
          %126 = sbr.rel (%p124) target = $region20
        $region19: #{tpu_custom_call.1} parent=11 // pred_region
          _
        $region20: #{tpu_custom_call.1} parent=11 // pred_fallthru
          _
      $region12: #{tpu_custom_call.1} parent=5 // pred_fallthru
        _
      %p127 = scmp.lt.s32.totalorder %s12, 2
      // Predicated region
      $region21: #{tpu_custom_call.1} parent=5 // pred_check
        %p128 = pneg %p127
      $region22: #{tpu_custom_call.1} parent=5 // pred_check_branch
        %130 = sbr.rel (%p128) target = $region24
      $region23: #{tpu_custom_call.1} parent=5 // pred_region
        // Predicated region
        $region25: #{tpu_custom_call.1} parent=23 // pred_check
          %p131 = pneg %p32
        $region26: #{tpu_custom_call.1} parent=23 // pred_check_branch
          %133 = sbr.rel (%p131) target = $region28
        $region27: #{tpu_custom_call.1} parent=23 // pred_region
          %s134 = smul.u32 8, %s12
          %p135 = scmp.lt.s32.totalorder %s134, 15
          %s136 = scalar_select %p135, %s134, 15
          %s137 = smul.addr %s136, 4
          %s138 = scalar_lea.vmem %s0, %s137
          %s139 = smul.u32 8, %s12
        $region28: #{tpu_custom_call.1} parent=23 // pred_fallthru
          _
      $region24: #{tpu_custom_call.1} parent=5 // pred_fallthru
        _
      %p140 = scmp.le.s32.totalorder 1, %s12
      %p141 = scmp.lt.s32.totalorder %s12, 3
      %p142 = pnand %p140, %p141
      %p143 = pneg %p142
      // Predicated region
      $region29: #{tpu_custom_call.1} parent=5 // pred_check
        _
      $region30: #{tpu_custom_call.1} parent=5 // pred_check_branch
        %145 = sbr.rel (%p142) target = $region32
      $region31: #{tpu_custom_call.1} parent=5 // pred_region
        %s146 = ssub.s32 %s12, 1
        %s147 = smul.u32 8, %s17
        %p148 = scmp.lt.s32.totalorder %s147, 15
        %s149 = scalar_select %p148, %s147, 15
        %s150 = smul.addr %s149, 4
        %s151 = scalar_lea.vmem %s0, %s150
        %p152 = pneg %p38
        %p153 = pneg %p35
        %p154 = pneg %p59
        %p155 = pneg %p56
        %p156 = pneg %p80
        %p157 = pneg %p77
        %p158 = pneg %p106
        %p159 = pneg %p103
        %s160 = sand.u32 %s93, 1
        %s161 = scalar_lea.sflag [#allocation3], %s160
        %s162 = sand.u32 %s93, 1
        %s163 = smul.addr %s162, 32
        %s164 = scalar_lea.vmem [#allocation2], %s163
        %s165 = smul.u32 8, %s17
        %p166 = scmp.lt.s32.totalorder %s165, 15
        %s167 = scalar_select %p166, %s165, 15
        %s168 = smul.addr %s167, 4
        %s169 = scalar_lea.vmem %s0, %s168
        %s170 = smul.u32 8, %s17
        %s171 = smul.u32 8, %s17
        %v173 = vld [vmem:[%s169] sm:$0xf]
        %v174 = vld [vmem:[%s169 + $0x4] sm:$0xf]
        %v175 = vld [vmem:[%s169 + $0x8] sm:$0xf]
        %v176 = vld [vmem:[%s169 + $0xc] sm:$0xf]
        %v177 = vld [vmem:[%s169 + $0x10] sm:$0xf]
        %v178 = vld [vmem:[%s169 + $0x14] sm:$0xf]
        %v179 = vld [vmem:[%s169 + $0x18] sm:$0xf]
        %v180 = vld [vmem:[%s169 + $0x1c] sm:$0xf]
        %v181 = vld [vmem:[%s1] sm:$0xf]
        %v182 = vld [vmem:[%s1 + $0x4] sm:$0xf]
        %v183 = vld [vmem:[%s2] sm:$0x1]
        %v185 = vlaneseq
        %v186 = vshrl.u32 %v185, 7
        %v187 = vsub.s32 0, %v186
        %v188 = vrot.slane %v183, %v187
        %v198 = vunpack.c.l.b16 %v173
        %v199 = vunpack.c.l.b16 %v174
        %v200 = vunpack.c.l.b16 %v175
        %v201 = vunpack.c.l.b16 %v176
        %v202 = vunpack.c.l.b16 %v177
        %v203 = vunpack.c.l.b16 %v178
        %v204 = vunpack.c.l.b16 %v179
        %v205 = vunpack.c.l.b16 %v180
        %v206 = vpack.c.b16 %v199, %v198
        %v207 = vpack.c.b16 %v201, %v200
        %v208 = vpack.c.b16 %v203, %v202
        %v209 = vpack.c.b16 %v205, %v204
        %v212 = vunpack.c.l.b16 %v181
        %v213 = vunpack.c.l.b16 %v182
        %v214 = vpack.c.b16 %v213, %v212
        %vm216 = vcmask 130048
        %v218 = vsel %vm216, %v206, 0
        %v221 = vsel %vm216, %v207, 0
        %v224 = vsel %vm216, %v208, 0
        %v227 = vsel %vm216, %v209, 0
        %229 = vmatprep.subr.bf16.mxu0 0
        %230 = vmatpush1.bf16.msra.mxu0 %v214
        %231 = vmatprep.subr.bf16.mxu0 0
        %232 = vmatpush1.bf16.msra.mxu0 0
        %233 = vmatprep.subr.bf16.mxu0 0
        %234 = vmatpush1.bf16.msra.mxu0 0
        %235 = vmatprep.subr.bf16.mxu0 0
        %236 = vmatpush1.bf16.msra.mxu0 0
        %237 = vmatprep.subr.bf16.mxu0 0
        %238 = vmatpush1.bf16.msra.mxu0 0
        %239 = vmatprep.subr.bf16.mxu0 0
        %240 = vmatpush1.bf16.msra.mxu0 0
        %241 = vmatprep.subr.bf16.mxu0 0
        %242 = vmatpush1.bf16.msra.mxu0 0
        %243 = vmatprep.subr.bf16.mxu0 0
        %244 = vmatpush1.bf16.msra.mxu0 0
        %245 = vmatprep.subr.bf16.mxu0 0
        %246 = vmatpush1.bf16.msra.mxu0 0
        %247 = vmatprep.subr.bf16.mxu0 0
        %248 = vmatpush1.bf16.msra.mxu0 0
        %249 = vmatprep.subr.bf16.mxu0 0
        %250 = vmatpush1.bf16.msra.mxu0 0
        %251 = vmatprep.subr.bf16.mxu0 0
        %252 = vmatpush1.bf16.msra.mxu0 0
        %253 = vmatprep.subr.bf16.mxu0 0
        %254 = vmatpush1.bf16.msra.mxu0 0
        %255 = vmatprep.subr.bf16.mxu0 0
        %256 = vmatpush1.bf16.msra.mxu0 0
        %257 = vmatprep.subr.bf16.mxu0 0
        %258 = vmatpush1.bf16.msra.mxu0 0
        %259 = vmatprep.subr.bf16.mxu0 0
        %260 = vmatpush1.bf16.msra.mxu0 0
        %261 = vmatprep.mubr.bf16.mxu0 0
        %262 = vmatmul.mubr.bf16.gmra.mrb[0].mxu0 %v218
        %v263 = vpop.f32.mrb[0].mxu0
        %v264 = vadd.f32 %v188, %v263
        %v265 = vpop.f32.mrb[0].mxu0
        %v266 = vpop.f32.mrb[0].mxu0
        %v267 = vadd.f32 %v188, %v266
        %v268 = vpop.f32.mrb[0].mxu0
        %269 = vmatprep.mubr.bf16.mxu0 0
        %270 = vmatmul.mubr.bf16.gmra.mrb[0].mxu0 %v221
        %v271 = vpop.f32.mrb[0].mxu0
        %v272 = vadd.f32 %v188, %v271
        %v273 = vpop.f32.mrb[0].mxu0
        %v274 = vpop.f32.mrb[0].mxu0
        %v275 = vadd.f32 %v188, %v274
        %v276 = vpop.f32.mrb[0].mxu0
        %277 = vmatprep.mubr.bf16.mxu0 0
        %278 = vmatmul.mubr.bf16.gmra.mrb[0].mxu0 %v224
        %v279 = vpop.f32.mrb[0].mxu0
        %v280 = vadd.f32 %v188, %v279
        %v281 = vpop.f32.mrb[0].mxu0
        %v282 = vpop.f32.mrb[0].mxu0
        %v283 = vadd.f32 %v188, %v282
        %v284 = vpop.f32.mrb[0].mxu0
        %285 = vmatprep.mubr.bf16.mxu0 0
        %286 = vmatmul.mubr.bf16.gmra.mrb[0].mxu0 %v227
        %v287 = vpop.f32.mrb[0].mxu0
        %v288 = vadd.f32 %v188, %v287
        %v289 = vpop.f32.mrb[0].mxu0
        %v290 = vpop.f32.mrb[0].mxu0
        %v291 = vadd.f32 %v188, %v290
        %v292 = vpop.f32.mrb[0].mxu0
        %293 = vdwg.mxu0
        %v294 = vxor.u32 %v264, 2147483648
        %v295 = vxor.u32 %v267, 2147483648
        %v296 = vxor.u32 %v272, 2147483648
        %v297 = vxor.u32 %v275, 2147483648
        %v298 = vxor.u32 %v280, 2147483648
        %v299 = vxor.u32 %v283, 2147483648
        %v300 = vxor.u32 %v288, 2147483648
        %v301 = vxor.u32 %v291, 2147483648
        %v302 = vmul.f32 %v294, 1.442695
        %v303 = vpow.pop %v302
        %v304 = vmul.f32 %v295, 1.442695
        %v305 = vpow.pop %v304
        %v306 = vmul.f32 %v296, 1.442695
        %v307 = vpow.pop %v306
        %v308 = vmul.f32 %v297, 1.442695
        %v309 = vpow.pop %v308
        %v310 = vmul.f32 %v298, 1.442695
        %v311 = vpow.pop %v310
        %v312 = vmul.f32 %v299, 1.442695
        %v313 = vpow.pop %v312
        %v314 = vmul.f32 %v300, 1.442695
        %v315 = vpow.pop %v314
        %v316 = vmul.f32 %v301, 1.442695
        %v317 = vpow.pop %v316
        %v318 = vadd.f32 %v303, 1.0
        %v319 = vadd.f32 %v305, 1.0
        %v320 = vadd.f32 %v307, 1.0
        %v321 = vadd.f32 %v309, 1.0
        %v322 = vadd.f32 %v311, 1.0
        %v323 = vadd.f32 %v313, 1.0
        %v324 = vadd.f32 %v315, 1.0
        %v325 = vadd.f32 %v317, 1.0
        %v326 = vrcp.pop %v318
        %v327 = vmul.f32 1.0, %v326
        %v328 = vrcp.pop %v319
        %v329 = vmul.f32 1.0, %v328
        %v330 = vrcp.pop %v320
        %v331 = vmul.f32 1.0, %v330
        %v332 = vrcp.pop %v321
        %v333 = vmul.f32 1.0, %v332
        %v334 = vrcp.pop %v322
        %v335 = vmul.f32 1.0, %v334
        %v336 = vrcp.pop %v323
        %v337 = vmul.f32 1.0, %v336
        %v338 = vrcp.pop %v324
        %v339 = vmul.f32 1.0, %v338
        %v340 = vrcp.pop %v325
        %v341 = vmul.f32 1.0, %v340
        %v342 = vmul.f32 %v264, %v327
        %v343 = vmul.f32 %v267, %v329
        %v344 = vmul.f32 %v272, %v331
        %v345 = vmul.f32 %v275, %v333
        %v346 = vmul.f32 %v280, %v335
        %v347 = vmul.f32 %v283, %v337
        %v348 = vmul.f32 %v288, %v339
        %v349 = vmul.f32 %v291, %v341
        %v350 = vpack.c.bf16 %v343, %v342
        %v351 = vpack.c.bf16 %v345, %v344
        %v352 = vpack.c.bf16 %v347, %v346
        %v353 = vpack.c.bf16 %v349, %v348
        %v358 = vunpack.c.l.b16 %v350
        %v359 = vunpack.c.h.b16 %v350
        %v360 = vunpack.c.l.b16 %v351
        %v361 = vunpack.c.h.b16 %v351
        %v362 = vunpack.c.l.b16 %v352
        %v363 = vunpack.c.h.b16 %v352
        %v364 = vunpack.c.l.b16 %v353
        %v365 = vunpack.c.h.b16 %v353
        %v366 = vpack.c.b16 %v358, %v358
        %v367 = vpack.c.b16 %v359, %v359
        %v368 = vpack.c.b16 %v360, %v360
        %v369 = vpack.c.b16 %v361, %v361
        %v370 = vpack.c.b16 %v362, %v362
        %v371 = vpack.c.b16 %v363, %v363
        %v372 = vpack.c.b16 %v364, %v364
        %v373 = vpack.c.b16 %v365, %v365
        %382 = vst [vmem:[%s164] sm:$0xf] %v366
        %383 = vst [vmem:[%s164 + $0x4] sm:$0xf] %v367
        %384 = vst [vmem:[%s164 + $0x8] sm:$0xf] %v368
        %385 = vst [vmem:[%s164 + $0xc] sm:$0xf] %v369
        %386 = vst [vmem:[%s164 + $0x10] sm:$0xf] %v370
        %387 = vst [vmem:[%s164 + $0x14] sm:$0xf] %v371
        %388 = vst [vmem:[%s164 + $0x18] sm:$0xf] %v372
        %389 = vst [vmem:[%s164 + $0x1c] sm:$0xf] %v373
        %s390 = sand.u32 %s93, 1
        %s391 = scalar_lea.sflag [#allocation3], %s390
        %s392 = sand.u32 %s93, 1
        %s393 = smul.addr %s392, 32
        %s394 = scalar_lea.vmem [#allocation2], %s393
        // Predicated region
        $region33: #{tpu_custom_call.1} parent=31 // pred_check
          %p395 = pneg %p103
        $region34: #{tpu_custom_call.1} parent=31 // pred_check_branch
          %397 = sbr.rel (%p395) target = $region36
        $region35: #{tpu_custom_call.1} parent=31 // pred_region
          %s398 = smul.u32 8, %s17
          %s400 = ssub.s32 512, 512
          %401 = vsyncadd %s391, %s400
          %s402 = smul.addr %s398, 64
          %s403 = scalar_lea.hbm %s3, %s402
          %s404 = sshll.u32 %s394, 4
          %s405 = int_to_ptr.vmem [resolvable:$true] %s404
          %410 = dma.vmem_to_hbm [thread:$0]  %s405, 512, %s403, %s391, 64, 64, 4
        $region36: #{tpu_custom_call.1} parent=31 // pred_fallthru
          _
      $region32: #{tpu_custom_call.1} parent=5 // pred_fallthru
        _
      %p411 = scmp.le.s32.totalorder 2, %s12
      // Predicated region
      $region37: #{tpu_custom_call.1} parent=5 // pred_check
        %p412 = pneg %p411
      $region38: #{tpu_custom_call.1} parent=5 // pred_check_branch
        %414 = sbr.rel (%p412) target = $region40
      $region39: #{tpu_custom_call.1} parent=5 // pred_region
        %s415 = ssub.s32 %s12, 2
        // Predicated region
        $region41: #{tpu_custom_call.1} parent=39 // pred_check
          %p416 = pneg %p109
        $region42: #{tpu_custom_call.1} parent=39 // pred_check_branch
          %418 = sbr.rel (%p416) target = $region44
        $region43: #{tpu_custom_call.1} parent=39 // pred_region
          %s419 = sand.u32 %s94, 1
          %s420 = scalar_lea.sflag [#allocation3], %s419
          %s421 = sand.u32 %s94, 1
          %s422 = smul.addr %s421, 32
          %s423 = scalar_lea.vmem [#allocation2], %s422
          %424 = dma.done %s420, 512
        $region44: #{tpu_custom_call.1} parent=39 // pred_fallthru
          _
      $region40: #{tpu_custom_call.1} parent=5 // pred_fallthru
        _
    $region6: #{tpu_custom_call.1} parent=1 // loop_footer
      %s16 = sadd.s32 1, %s12
    $region7: #{tpu_custom_call.1} parent=1 // loop_footer_branch
      %11 = sbr.rel target = $region3
    $region8: #{tpu_custom_call.1} parent=1 // loop_exit
      _
    %425 = vsyncpa [#allocation3], 1
    %s426 = scalar_lea.sflag [#allocation3], 1
    %427 = vsyncpa %s426, 1

</llo_original>
